<compile_context>
chip_gen: v6e
topology: v6e:2x2x1
jax: 0.10.0
libtpu: 0.0.40
codegen_flags: <defaults>
</compile_context>

<pallas_src>
import jax
import jax.numpy as jnp
from jax import lax
import numpy as np
from jax.experimental import pallas as pl
from jax.experimental.pallas import tpu as pltpu


def _round_up(x, m):
    return (x + m - 1) // m * m


def nin_block_kernel(p_ref, w1_ref, b1_ref, w2_ref, b2_ref, w3_ref, b3_ref, o_ref):
    # p_ref : (9*C, TILE_M) bf16  im2col patch columns for this (batch, pixel-tile)
    # w1_ref: (Cp, 9*C)     bf16  3x3/s2 conv as matmul; cols ordered (cin, kh, kw)
    # w2/w3 : (Cp, Cp)      bf16  1x1 convs (zero-padded rows/cols beyond C)
    # b*    : (Cp, 1)       f32   biases, broadcast along the lane (pixel) axis
    # o_ref : (Cp, TILE_M)  f32   lane-dense output tile
    h = jnp.dot(w1_ref[...], p_ref[...], preferred_element_type=jnp.float32)
    h = jnp.maximum(h + b1_ref[...], 0.0)
    h = jnp.dot(w2_ref[...], h.astype(w2_ref.dtype), preferred_element_type=jnp.float32)
    h = jnp.maximum(h + b2_ref[...], 0.0)
    h = jnp.dot(w3_ref[...], h.astype(w3_ref.dtype), preferred_element_type=jnp.float32)
    h = jnp.maximum(h + b3_ref[...], 0.0)
    # Dropout (eval mode) == identity.
    o_ref[...] = h.astype(o_ref.dtype)


def nin_block_forward(x_nchw, w1_oihw, b1, w2_oi, b2, w3_oi, b3, *, tile_m=None):
    N, C, H, W = x_nchw.shape
    Ho = (H + 2 - 3) // 2 + 1
    Wo = (W + 2 - 3) // 2 + 1
    HoWo = Ho * Wo
    K = 9 * C
    Cp = _round_up(C, 8)                                   # sublane-friendly channel count
    patch_dt = jnp.bfloat16                                # MXU-native operand dtype
    out_dt = x_nchw.dtype
    patch_item = 2
    out_item = jnp.dtype(out_dt).itemsize

    # ---- generation-aware tile sizing ----
    try:
        vmem_cap = int(pltpu.get_tpu_info().vmem_capacity_bytes)
    except Exception:
        vmem_cap = 64 * 1024 * 1024                        # conservative: v7x per-TC VMEM
    budget = min(int(0.45 * vmem_cap), 96 * 1024 * 1024)
    # Resident weights/biases are double-buffered by Pallas by default -> count them twice.
    resident = 2 * ((Cp * K + 2 * Cp * Cp) * patch_item + 3 * Cp * 4)
    # Streamed patch + output blocks, double-buffered, per lane-column.
    per_lane = 2 * (K * patch_item + Cp * out_item)
    if tile_m is None:
        tile_cap = 4096 if vmem_cap > 96 * 1024 * 1024 else 2048   # smaller cap on 64 MiB/TC parts
        tile_m = min(tile_cap, max(128, (budget - resident) // per_lane))
    tile_m = max(128, min(int(tile_m), _round_up(HoWo, 128)))
    tile_m = tile_m // 128 * 128                           # lane-dense blocks (multiple of 128)
    # Keep >= ~8 grid steps where possible so "parallel" axes load-balance v7x's 2 TCs.
    while tile_m > 256 and N * pl.cdiv(HoWo, tile_m) < 8:
        tile_m = max(256, (tile_m // 2) // 128 * 128)
    m_pad = _round_up(HoWo, tile_m)

    # ---- host glue: spatial pad + 9 strided taps, kept batch-major so no cross-batch
    # transpose runs in HBM and the output needs no transpose back to NCHW. ----
    # TODO(synk): fuse this im2col into the kernel (memory_space=pl.ANY + strided manual DMA).
    xp = jnp.pad(x_nchw, ((0, 0), (0, 0), (1, 1), (1, 1)))            # (N, C, H+2, W+2)
    taps = [xp[:, :, kh:kh + 2 * Ho:2, kw:kw + 2 * Wo:2]
            for kh in range(3) for kw in range(3)]                    # 9 x (N, C, Ho, Wo)
    patches = jnp.stack(taps, axis=2).reshape(N, K, HoWo)             # rows ordered (cin,kh,kw)
    patches = jnp.pad(patches, ((0, 0), (0, 0), (0, m_pad - HoWo))).astype(patch_dt)

    w1_mat = jnp.pad(w1_oihw.reshape(C, K), ((0, Cp - C), (0, 0))).astype(patch_dt)
    w2_mat = jnp.pad(w2_oi, ((0, Cp - C), (0, Cp - C))).astype(patch_dt)
    w3_mat = jnp.pad(w3_oi, ((0, Cp - C), (0, Cp - C))).astype(patch_dt)
    b1c = jnp.pad(b1, (0, Cp - C)).reshape(Cp, 1).astype(jnp.float32)
    b2c = jnp.pad(b2, (0, Cp - C)).reshape(Cp, 1).astype(jnp.float32)
    b3c = jnp.pad(b3, (0, Cp - C)).reshape(Cp, 1).astype(jnp.float32)

    vmem_need = per_lane * tile_m + resident
    vmem_limit = int(min(0.75 * vmem_cap, max(2 * vmem_need, 32 * 1024 * 1024)))

    flops = 2 * N * m_pad * (Cp * K + 2 * Cp * Cp)
    bytes_accessed = (patches.size * patch_item
                      + N * Cp * m_pad * out_item
                      + (w1_mat.size + w2_mat.size + w3_mat.size) * patch_item
                      + (b1c.size + b2c.size + b3c.size) * 4)
    cost = pl.CostEstimate(flops=flops, transcendentals=0, bytes_accessed=bytes_accessed)

    grid = (N, m_pad // tile_m)

    out = pl.pallas_call(
        nin_block_kernel,
        out_shape=jax.ShapeDtypeStruct((N, Cp, m_pad), out_dt),
        grid=grid,
        in_specs=[
            pl.BlockSpec((None, K, tile_m), lambda n, i: (n, 0, i)),   # streamed patch tile
            pl.BlockSpec((Cp, K), lambda n, i: (0, 0)),                # resident weights / biases
            pl.BlockSpec((Cp, 1), lambda n, i: (0, 0)),
            pl.BlockSpec((Cp, Cp), lambda n, i: (0, 0)),
            pl.BlockSpec((Cp, 1), lambda n, i: (0, 0)),
            pl.BlockSpec((Cp, Cp), lambda n, i: (0, 0)),
            pl.BlockSpec((Cp, 1), lambda n, i: (0, 0)),
        ],
        out_specs=pl.BlockSpec((None, Cp, tile_m), lambda n, i: (n, 0, i)),
        compiler_params=pltpu.CompilerParams(
            dimension_semantics=("parallel", "parallel"),              # megacore sharding on v7x
            vmem_limit_bytes=vmem_limit,
        ),
        cost_estimate=cost,
    )(patches, w1_mat, b1c, w2_mat, b2c, w3_mat, b3c)

    # Drop channel / pixel padding; already batch-major, so no transpose needed.
    return out[:, :C, :HoWo].reshape(N, C, Ho, Wo)


def reference_forward(x_nchw, w1_oihw, b1, w2_oi, b2, w3_oi, b3):
    """Pure-JAX f32 reference (lax conv, PyTorch NCHW/OIHW layouts)."""
    y = lax.conv_general_dilated(
        x_nchw, w1_oihw, window_strides=(2, 2), padding=((1, 1), (1, 1)),
        dimension_numbers=('NCHW', 'OIHW', 'NCHW'))
    y = jnp.maximum(y + b1[None, :, None, None], 0.0)
    y = jnp.maximum(jnp.einsum('oc,nchw->nohw', w2_oi, y) + b2[None, :, None, None], 0.0)
    y = jnp.maximum(jnp.einsum('oc,nchw->nohw', w3_oi, y) + b3[None, :, None, None], 0.0)
    return y


if __name__ == "__main__":
    # M per batch = 32*32 = 1024 output pixels; auto tiling picks TILE_M=256 ->
    # grid (2, 4) = 8 steps, exercising the software pipeline and megacore split.
    N, C, H, W = 2, 4, 64, 64
    key = jax.random.PRNGKey(0)
    kx, k1, k2, k3, kb1, kb2, kb3 = jax.random.split(key, 7)

    x = jax.random.normal(kx, (N, C, H, W), dtype=jnp.float32)

    # Synthetic parameters in PyTorch layouts: 3x3 conv weight OIHW,
    # 1x1 conv weights as (cout, cin) (== weight[:, :, 0, 0]).
    w1 = jax.random.normal(k1, (C, C, 3, 3), dtype=jnp.float32) * 0.1
    b1 = jax.random.normal(kb1, (C,), dtype=jnp.float32) * 0.05
    w2 = jax.random.normal(k2, (C, C), dtype=jnp.float32) * 0.2
    b2 = jax.random.normal(kb2, (C,), dtype=jnp.float32) * 0.05
    w3 = jax.random.normal(k3, (C, C), dtype=jnp.float32) * 0.2
    b3 = jax.random.normal(kb3, (C,), dtype=jnp.float32) * 0.05

    out = jax.block_until_ready(nin_block_forward(x, w1, b1, w2, b2, w3, b3))
    ref = jax.block_until_ready(reference_forward(x, w1, b1, w2, b2, w3, b3))

    assert out.shape == (N, C, H // 2, W // 2), out.shape
    # bf16 matmul operands (f32 accumulate) vs f32 reference -> loosened tolerance.
    np.testing.assert_allclose(np.asarray(out), np.asarray(ref), rtol=2e-2, atol=2e-2)

    print("KERNEL_OK")
</pallas_src>

<mosaic_0001>
module attributes {stable_mosaic.version = 11 : i64} {
  func.func @nin_block_kernel(%arg0: i32, %arg1: i32, %arg2: memref<1x36x256xbf16, #tpu.memory_space<vmem>>, %arg3: memref<8x36xbf16, #tpu.memory_space<vmem>>, %arg4: memref<8x1xf32, #tpu.memory_space<vmem>>, %arg5: memref<8x8xbf16, #tpu.memory_space<vmem>>, %arg6: memref<8x1xf32, #tpu.memory_space<vmem>>, %arg7: memref<8x8xbf16, #tpu.memory_space<vmem>>, %arg8: memref<8x1xf32, #tpu.memory_space<vmem>>, %arg9: memref<1x8x256xf32, #tpu.memory_space<vmem>>) attributes {dimension_semantics = [#tpu.dimension_semantics<parallel>, #tpu.dimension_semantics<parallel>], iteration_bounds = array<i64: 2, 4>, scalar_prefetch = 0 : i64, scratch_operands = 0 : i64, tpu.core_type = #tpu.core_type<tc>, window_params = [{transform_indices = @transform_0, window_bounds = array<i64: 1, 36, 256>}, {pipeline_mode = #tpu.pipeline_mode<synchronous>, transform_indices = @transform_1, window_bounds = array<i64: 8, 36>}, {pipeline_mode = #tpu.pipeline_mode<synchronous>, transform_indices = @transform_2, window_bounds = array<i64: 8, 1>}, {pipeline_mode = #tpu.pipeline_mode<synchronous>, transform_indices = @transform_3, window_bounds = array<i64: 8, 8>}, {pipeline_mode = #tpu.pipeline_mode<synchronous>, transform_indices = @transform_4, window_bounds = array<i64: 8, 1>}, {pipeline_mode = #tpu.pipeline_mode<synchronous>, transform_indices = @transform_5, window_bounds = array<i64: 8, 8>}, {pipeline_mode = #tpu.pipeline_mode<synchronous>, transform_indices = @transform_6, window_bounds = array<i64: 8, 1>}, {transform_indices = @transform_7, window_bounds = array<i64: 1, 8, 256>}]} {
    %c0 = arith.constant 0 : index
    %c0_0 = arith.constant 0 : index
    %0 = vector.load %arg3[%c0, %c0_0] : memref<8x36xbf16, #tpu.memory_space<vmem>>, vector<8x36xbf16>
    %c0_1 = arith.constant 0 : index
    %c0_2 = arith.constant 0 : index
    %c0_3 = arith.constant 0 : index
    %1 = vector.load %arg2[%c0_1, %c0_2, %c0_3] : memref<1x36x256xbf16, #tpu.memory_space<vmem>>, vector<1x36x256xbf16>
    %2 = vector.shape_cast %1 : vector<1x36x256xbf16> to vector<36x256xbf16>
    %cst = arith.constant dense<0.000000e+00> : vector<8x256xf32>
    %3 = tpu.matmul %0, %2, %cst {dimension_numbers = #tpu.dot_dimension_numbers<[1], [0], [0], [1], [0, 0, 1, 1], [], []>} : vector<8x36xbf16>, vector<36x256xbf16>, vector<8x256xf32> -> vector<8x256xf32>
    %c0_4 = arith.constant 0 : index
    %c0_5 = arith.constant 0 : index
    %4 = vector.load %arg4[%c0_4, %c0_5] : memref<8x1xf32, #tpu.memory_space<vmem>>, vector<8x1xf32>
    %5 = vector.broadcast %4 : vector<8x1xf32> to vector<8x256xf32>
    %6 = arith.addf %3, %5 : vector<8x256xf32>
    %cst_6 = arith.constant 0.000000e+00 : f32
    %7 = vector.broadcast %cst_6 : f32 to vector<8x256xf32>
    %8 = arith.maximumf %6, %7 : vector<8x256xf32>
    %c0_7 = arith.constant 0 : index
    %c0_8 = arith.constant 0 : index
    %9 = vector.load %arg5[%c0_7, %c0_8] : memref<8x8xbf16, #tpu.memory_space<vmem>>, vector<8x8xbf16>
    %10 = arith.truncf %8 : vector<8x256xf32> to vector<8x256xbf16>
    %cst_9 = arith.constant dense<0.000000e+00> : vector<8x256xf32>
    %11 = tpu.matmul %9, %10, %cst_9 {dimension_numbers = #tpu.dot_dimension_numbers<[1], [0], [0], [1], [0, 0, 1, 1], [], []>} : vector<8x8xbf16>, vector<8x256xbf16>, vector<8x256xf32> -> vector<8x256xf32>
    %c0_10 = arith.constant 0 : index
    %c0_11 = arith.constant 0 : index
    %12 = vector.load %arg6[%c0_10, %c0_11] : memref<8x1xf32, #tpu.memory_space<vmem>>, vector<8x1xf32>
    %13 = vector.broadcast %12 : vector<8x1xf32> to vector<8x256xf32>
    %14 = arith.addf %11, %13 : vector<8x256xf32>
    %cst_12 = arith.constant 0.000000e+00 : f32
    %15 = vector.broadcast %cst_12 : f32 to vector<8x256xf32>
    %16 = arith.maximumf %14, %15 : vector<8x256xf32>
    %c0_13 = arith.constant 0 : index
    %c0_14 = arith.constant 0 : index
    %17 = vector.load %arg7[%c0_13, %c0_14] : memref<8x8xbf16, #tpu.memory_space<vmem>>, vector<8x8xbf16>
    %18 = arith.truncf %16 : vector<8x256xf32> to vector<8x256xbf16>
    %cst_15 = arith.constant dense<0.000000e+00> : vector<8x256xf32>
    %19 = tpu.matmul %17, %18, %cst_15 {dimension_numbers = #tpu.dot_dimension_numbers<[1], [0], [0], [1], [0, 0, 1, 1], [], []>} : vector<8x8xbf16>, vector<8x256xbf16>, vector<8x256xf32> -> vector<8x256xf32>
    %c0_16 = arith.constant 0 : index
    %c0_17 = arith.constant 0 : index
    %20 = vector.load %arg8[%c0_16, %c0_17] : memref<8x1xf32, #tpu.memory_space<vmem>>, vector<8x1xf32>
    %21 = vector.broadcast %20 : vector<8x1xf32> to vector<8x256xf32>
    %22 = arith.addf %19, %21 : vector<8x256xf32>
    %cst_18 = arith.constant 0.000000e+00 : f32
    %23 = vector.broadcast %cst_18 : f32 to vector<8x256xf32>
    %24 = arith.maximumf %22, %23 : vector<8x256xf32>
    %c0_19 = arith.constant 0 : index
    %c0_20 = arith.constant 0 : index
    %c0_21 = arith.constant 0 : index
    %25 = vector.load %arg9[%c0_19, %c0_20, %c0_21] : memref<1x8x256xf32, #tpu.memory_space<vmem>>, vector<1x8x256xf32>
    %26 = vector.shape_cast %25 : vector<1x8x256xf32> to vector<8x256xf32>
    %27 = vector.shape_cast %24 : vector<8x256xf32> to vector<1x8x256xf32>
    tpu.vector_store %arg9[%c0_19, %c0_20, %c0_21], %27 {strides = array<i32>} : memref<1x8x256xf32, #tpu.memory_space<vmem>>, vector<1x8x256xf32>,
    return
  }
  func.func @transform_0(%arg0: i32, %arg1: i32) -> (i32, i32, i32) {
    %c0_i32 = arith.constant 0 : i32
    %c0_i32_0 = arith.constant 0 : i32
    return %arg0, %c0_i32, %arg1 : i32, i32, i32
  }
  func.func @transform_1(%arg0: i32, %arg1: i32) -> (i32, i32) {
    %c0_i32 = arith.constant 0 : i32
    %c0_i32_0 = arith.constant 0 : i32
    %c0_i32_1 = arith.constant 0 : i32
    return %c0_i32, %c0_i32_0 : i32, i32
  }
  func.func @transform_2(%arg0: i32, %arg1: i32) -> (i32, i32) {
    %c0_i32 = arith.constant 0 : i32
    %c0_i32_0 = arith.constant 0 : i32
    %c0_i32_1 = arith.constant 0 : i32
    return %c0_i32, %c0_i32_0 : i32, i32
  }
  func.func @transform_3(%arg0: i32, %arg1: i32) -> (i32, i32) {
    %c0_i32 = arith.constant 0 : i32
    %c0_i32_0 = arith.constant 0 : i32
    %c0_i32_1 = arith.constant 0 : i32
    return %c0_i32, %c0_i32_0 : i32, i32
  }
  func.func @transform_4(%arg0: i32, %arg1: i32) -> (i32, i32) {
    %c0_i32 = arith.constant 0 : i32
    %c0_i32_0 = arith.constant 0 : i32
    %c0_i32_1 = arith.constant 0 : i32
    return %c0_i32, %c0_i32_0 : i32, i32
  }
  func.func @transform_5(%arg0: i32, %arg1: i32) -> (i32, i32) {
    %c0_i32 = arith.constant 0 : i32
    %c0_i32_0 = arith.constant 0 : i32
    %c0_i32_1 = arith.constant 0 : i32
    return %c0_i32, %c0_i32_0 : i32, i32
  }
  func.func @transform_6(%arg0: i32, %arg1: i32) -> (i32, i32) {
    %c0_i32 = arith.constant 0 : i32
    %c0_i32_0 = arith.constant 0 : i32
    %c0_i32_1 = arith.constant 0 : i32
    return %c0_i32, %c0_i32_0 : i32, i32
  }
  func.func @transform_7(%arg0: i32, %arg1: i32) -> (i32, i32, i32) {
    %c0_i32 = arith.constant 0 : i32
    %c0_i32_0 = arith.constant 0 : i32
    return %arg0, %c0_i32, %arg1 : i32, i32, i32
  }
}

</mosaic_0001>

<llo_original>
// kernel: tpu_custom_call.1
$region0: #{tpu_custom_call.1}
  #allocation0 [shape = 'u32[]', space=smem, size = 0x4, offset = 0x4, fixed_abs, tag = 'smem constant byte address 0x4 - core index']
  #allocation1 [shape = 'u32[144,128]{1,0:T(1,128)}', space=vmem, size = 0x12000, scoped, tag = 'internal scratch']
  %s0 = inlined_call_operand.vmem [shape: bf16[2,36,1024], index: 0, kind: input, shape index: {}]
  %s1 = inlined_call_operand.vmem [shape: bf16[8,36], index: 1, kind: input, shape index: {}]
  %s2 = inlined_call_operand.vmem [shape: f32[8,1], index: 2, kind: input, shape index: {}]
  %s3 = inlined_call_operand.vmem [shape: bf16[8,8], index: 3, kind: input, shape index: {}]
  %s4 = inlined_call_operand.vmem [shape: f32[8,1], index: 4, kind: input, shape index: {}]
  %s5 = inlined_call_operand.vmem [shape: bf16[8,8], index: 5, kind: input, shape index: {}]
  %s6 = inlined_call_operand.vmem [shape: f32[8,1], index: 6, kind: input, shape index: {}]
  %s7 = inlined_call_operand.hbm [shape: f32[2,8,1024], index: 7, kind: output, shape index: {}]
  %s8 = sld [smem:[#allocation0]]
  $region99: #{tpu_custom_call.1} parent=0
    _
  %s10 = ssub.s32 1, %s8
  %s11 = scalar_select 0, %s10, %s8
  $region1: #{tpu_custom_call.1} parent=0
    #allocation2 [shape = 'u8[40960]{0}', space=vmem, size = 0xa000, scoped, tag = 'input window, operand 0']
    #allocation3 [shape = 'u8[16384]{0}', space=vmem, size = 0x4000, scoped, tag = 'output window, operand 0']
    #allocation4 [shape = 's32[2]{0}', space=sflag, size = 0x8, scoped, tag = 'scoped memory for tpu_custom_call.1']
    %12 = vsyncpa [#allocation4], 0
    %s13 = scalar_lea.sflag [#allocation4], 1
    %14 = vsyncpa %s13, 0
    loop: start=0, step=1, limit=10
    $region2: #{tpu_custom_call.1} parent=1 // loop_pre_header
      _
    $region3: #{tpu_custom_call.1} parent=1 // loop_header
      %s16 = sphi 0, %s20
      %p17 = scmp.ge.s32.totalorder %s16, 10
      %s23 = sphi 0, %s35
      %s24 = sphi 0, %s31
      %s25 = sphi 0, %s23
      %s26 = sphi 0, %s24
      %s27 = sphi 0, %s25
      %s28 = sphi 0, %s26
      %s40 = sphi 0, %s42
      %s43 = sphi 0, %s40
      %s44 = sphi 0, %s43
      %s60 = sphi 0, %s44
      %s64 = sphi 0, %s64
      %s66 = sphi 0, %s64
      %s67 = sphi 0, %s66
      %s81 = sphi 0, %s67
      %s85 = sphi 0, %s85
      %s87 = sphi 0, %s85
      %s88 = sphi 0, %s87
      %s102 = sphi 0, %s88
      %s106 = sphi 0, %s106
      %s108 = sphi 0, %s106
      %s109 = sphi 0, %s108
      %s123 = sphi 0, %s109
      %s127 = sphi 0, %s127
      %s129 = sphi 0, %s127
      %s130 = sphi 0, %s129
      %s144 = sphi 0, %s130
      %s148 = sphi 0, %s148
      %s150 = sphi 0, %s148
      %s151 = sphi 0, %s150
      %s165 = sphi 0, %s151
      %s169 = sphi 0, %s169
      %s171 = sphi 0, %s169
      %s172 = sphi 0, %s171
      %s186 = sphi 0, %s172
      %s194 = sphi 0, %s196
      %s197 = sphi 0, %s194
      %s198 = sphi 0, %s197
      %s214 = sphi 0, %s198
    $region4: #{tpu_custom_call.1} parent=1 // loop_header_branch
      %19 = sbr.rel (%p17) target = $region8
    $region5: #{tpu_custom_call.1} parent=1 // loop_body
      %s21 = ssub.s32 %s16, 1
      %s22 = ssub.s32 %s16, 2
      %s29 = sadd.s32 1, %s24
      %p30 = scmp.ge.s32.totalorder %s29, 4
      %s31 = scalar_select %p30, 0, %s29
      %s32 = sadd.s32 1, %s23
      %s33 = scalar_select %p30, %s32, %s23
      %p34 = scmp.ge.s32.totalorder %s33, 2
      %s35 = scalar_select %p34, 0, %s33
      %s36 = ssub.s32 %s23, %s35
      %s37 = ssub.s32 %s24, %s31
      %s38 = sor.u32 %s36, %s37
      %p39 = scmp.eq.s32.totalorder %s38, 0
      %s41 = sadd.s32 %s40, 1
      %s42 = scalar_select %p39, %s40, %s41
      %p45 = pneg %p39
      %p46 = scmp.eq.s32.totalorder %s16, 7
      %p47 = por %p45, %p46
      %p48 = scmp.ne.s32.totalorder %s40, %s43
      %p49 = scmp.eq.s32.totalorder %s16, 0
      %p50 = por %p48, %p49
      %p51 = scmp.ne.s32.totalorder %s40, %s43
      %p52 = scmp.eq.s32.totalorder %s21, 7
      %p53 = por %p51, %p52
      %p54 = scmp.ne.s32.totalorder %s43, %s44
      %p55 = scmp.eq.s32.totalorder %s21, 0
      %p56 = por %p54, %p55
      %p57 = scmp.ne.s32.totalorder %s43, %s44
      %p58 = scmp.eq.s32.totalorder %s22, 7
      %p59 = por %p57, %p58
      %p61 = scmp.ne.s32.totalorder %s44, %s60
      %p62 = scmp.eq.s32.totalorder %s22, 0
      %p63 = por %p61, %p62
      %s65 = sadd.s32 %s64, 1
      %p68 = scmp.eq.s32.totalorder %s16, 7
      %p69 = scmp.ne.s32.totalorder %s64, %s66
      %p70 = scmp.eq.s32.totalorder %s16, 0
      %p71 = por %p69, %p70
      %p72 = scmp.ne.s32.totalorder %s64, %s66
      %p73 = scmp.eq.s32.totalorder %s21, 7
      %p74 = por %p72, %p73
      %p75 = scmp.ne.s32.totalorder %s66, %s67
      %p76 = scmp.eq.s32.totalorder %s21, 0
      %p77 = por %p75, %p76
      %p78 = scmp.ne.s32.totalorder %s66, %s67
      %p79 = scmp.eq.s32.totalorder %s22, 7
      %p80 = por %p78, %p79
      %p82 = scmp.ne.s32.totalorder %s67, %s81
      %p83 = scmp.eq.s32.totalorder %s22, 0
      %p84 = por %p82, %p83
      %s86 = sadd.s32 %s85, 1
      %p89 = scmp.eq.s32.totalorder %s16, 7
      %p90 = scmp.ne.s32.totalorder %s85, %s87
      %p91 = scmp.eq.s32.totalorder %s16, 0
      %p92 = por %p90, %p91
      %p93 = scmp.ne.s32.totalorder %s85, %s87
      %p94 = scmp.eq.s32.totalorder %s21, 7
      %p95 = por %p93, %p94
      %p96 = scmp.ne.s32.totalorder %s87, %s88
      %p97 = scmp.eq.s32.totalorder %s21, 0
      %p98 = por %p96, %p97
      %p99 = scmp.ne.s32.totalorder %s87, %s88
      %p100 = scmp.eq.s32.totalorder %s22, 7
      %p101 = por %p99, %p100
      %p103 = scmp.ne.s32.totalorder %s88, %s102
      %p104 = scmp.eq.s32.totalorder %s22, 0
      %p105 = por %p103, %p104
      %s107 = sadd.s32 %s106, 1
      %p110 = scmp.eq.s32.totalorder %s16, 7
      %p111 = scmp.ne.s32.totalorder %s106, %s108
      %p112 = scmp.eq.s32.totalorder %s16, 0
      %p113 = por %p111, %p112
      %p114 = scmp.ne.s32.totalorder %s106, %s108
      %p115 = scmp.eq.s32.totalorder %s21, 7
      %p116 = por %p114, %p115
      %p117 = scmp.ne.s32.totalorder %s108, %s109
      %p118 = scmp.eq.s32.totalorder %s21, 0
      %p119 = por %p117, %p118
      %p120 = scmp.ne.s32.totalorder %s108, %s109
      %p121 = scmp.eq.s32.totalorder %s22, 7
      %p122 = por %p120, %p121
      %p124 = scmp.ne.s32.totalorder %s109, %s123
      %p125 = scmp.eq.s32.totalorder %s22, 0
      %p126 = por %p124, %p125
      %s128 = sadd.s32 %s127, 1
      %p131 = scmp.eq.s32.totalorder %s16, 7
      %p132 = scmp.ne.s32.totalorder %s127, %s129
      %p133 = scmp.eq.s32.totalorder %s16, 0
      %p134 = por %p132, %p133
      %p135 = scmp.ne.s32.totalorder %s127, %s129
      %p136 = scmp.eq.s32.totalorder %s21, 7
      %p137 = por %p135, %p136
      %p138 = scmp.ne.s32.totalorder %s129, %s130
      %p139 = scmp.eq.s32.totalorder %s21, 0
      %p140 = por %p138, %p139
      %p141 = scmp.ne.s32.totalorder %s129, %s130
      %p142 = scmp.eq.s32.totalorder %s22, 7
      %p143 = por %p141, %p142
      %p145 = scmp.ne.s32.totalorder %s130, %s144
      %p146 = scmp.eq.s32.totalorder %s22, 0
      %p147 = por %p145, %p146
      %s149 = sadd.s32 %s148, 1
      %p152 = scmp.eq.s32.totalorder %s16, 7
      %p153 = scmp.ne.s32.totalorder %s148, %s150
      %p154 = scmp.eq.s32.totalorder %s16, 0
      %p155 = por %p153, %p154
      %p156 = scmp.ne.s32.totalorder %s148, %s150
      %p157 = scmp.eq.s32.totalorder %s21, 7
      %p158 = por %p156, %p157
      %p159 = scmp.ne.s32.totalorder %s150, %s151
      %p160 = scmp.eq.s32.totalorder %s21, 0
      %p161 = por %p159, %p160
      %p162 = scmp.ne.s32.totalorder %s150, %s151
      %p163 = scmp.eq.s32.totalorder %s22, 7
      %p164 = por %p162, %p163
      %p166 = scmp.ne.s32.totalorder %s151, %s165
      %p167 = scmp.eq.s32.totalorder %s22, 0
      %p168 = por %p166, %p167
      %s170 = sadd.s32 %s169, 1
      %p173 = scmp.eq.s32.totalorder %s16, 7
      %p174 = scmp.ne.s32.totalorder %s169, %s171
      %p175 = scmp.eq.s32.totalorder %s16, 0
      %p176 = por %p174, %p175
      %p177 = scmp.ne.s32.totalorder %s169, %s171
      %p178 = scmp.eq.s32.totalorder %s21, 7
      %p179 = por %p177, %p178
      %p180 = scmp.ne.s32.totalorder %s171, %s172
      %p181 = scmp.eq.s32.totalorder %s21, 0
      %p182 = por %p180, %p181
      %p183 = scmp.ne.s32.totalorder %s171, %s172
      %p184 = scmp.eq.s32.totalorder %s22, 7
      %p185 = por %p183, %p184
      %p187 = scmp.ne.s32.totalorder %s172, %s186
      %p188 = scmp.eq.s32.totalorder %s22, 0
      %p189 = por %p187, %p188
      %s190 = ssub.s32 %s23, %s35
      %s191 = ssub.s32 %s24, %s31
      %s192 = sor.u32 %s190, %s191
      %p193 = scmp.eq.s32.totalorder %s192, 0
      %s195 = sadd.s32 %s194, 1
      %s196 = scalar_select %p193, %s194, %s195
      %p199 = pneg %p193
      %p200 = scmp.eq.s32.totalorder %s16, 7
      %p201 = por %p199, %p200
      %p202 = scmp.ne.s32.totalorder %s194, %s197
      %p203 = scmp.eq.s32.totalorder %s16, 0
      %p204 = por %p202, %p203
      %p205 = scmp.ne.s32.totalorder %s194, %s197
      %p206 = scmp.eq.s32.totalorder %s21, 7
      %p207 = por %p205, %p206
      %p208 = scmp.ne.s32.totalorder %s197, %s198
      %p209 = scmp.eq.s32.totalorder %s21, 0
      %p210 = por %p208, %p209
      %p211 = scmp.ne.s32.totalorder %s197, %s198
      %p212 = scmp.eq.s32.totalorder %s22, 7
      %p213 = por %p211, %p212
      %p215 = scmp.ne.s32.totalorder %s198, %s214
      %p216 = scmp.eq.s32.totalorder %s22, 0
      %p217 = por %p215, %p216
      %p218 = scmp.le.s32.totalorder 1, %s16
      %p219 = scmp.lt.s32.totalorder %s16, 9
      %p220 = pnand %p218, %p219
      %p221 = pneg %p220
      // Predicated region
      $region9: #{tpu_custom_call.1} parent=5 // pred_check
        _
      $region10: #{tpu_custom_call.1} parent=5 // pred_check_branch
        %223 = sbr.rel (%p220) target = $region12
      $region11: #{tpu_custom_call.1} parent=5 // pred_region
        %s224 = ssub.s32 %s16, 1
        // Predicated region
        $region13: #{tpu_custom_call.1} parent=11 // pred_check
          %p225 = pneg %p77
        $region14: #{tpu_custom_call.1} parent=11 // pred_check_branch
          %227 = sbr.rel (%p225) target = $region16
        $region15: #{tpu_custom_call.1} parent=11 // pred_region
          _
        $region16: #{tpu_custom_call.1} parent=11 // pred_fallthru
          _
        // Predicated region
        $region17: #{tpu_custom_call.1} parent=11 // pred_check
          %p228 = pneg %p98
        $region18: #{tpu_custom_call.1} parent=11 // pred_check_branch
          %230 = sbr.rel (%p228) target = $region20
        $region19: #{tpu_custom_call.1} parent=11 // pred_region
          _
        $region20: #{tpu_custom_call.1} parent=11 // pred_fallthru
          _
        // Predicated region
        $region21: #{tpu_custom_call.1} parent=11 // pred_check
          %p231 = pneg %p119
        $region22: #{tpu_custom_call.1} parent=11 // pred_check_branch
          %233 = sbr.rel (%p231) target = $region24
        $region23: #{tpu_custom_call.1} parent=11 // pred_region
          _
        $region24: #{tpu_custom_call.1} parent=11 // pred_fallthru
          _
        // Predicated region
        $region25: #{tpu_custom_call.1} parent=11 // pred_check
          %p234 = pneg %p140
        $region26: #{tpu_custom_call.1} parent=11 // pred_check_branch
          %236 = sbr.rel (%p234) target = $region28
        $region27: #{tpu_custom_call.1} parent=11 // pred_region
          _
        $region28: #{tpu_custom_call.1} parent=11 // pred_fallthru
          _
        // Predicated region
        $region29: #{tpu_custom_call.1} parent=11 // pred_check
          %p237 = pneg %p161
        $region30: #{tpu_custom_call.1} parent=11 // pred_check_branch
          %239 = sbr.rel (%p237) target = $region32
        $region31: #{tpu_custom_call.1} parent=11 // pred_region
          _
        $region32: #{tpu_custom_call.1} parent=11 // pred_fallthru
          _
        // Predicated region
        $region33: #{tpu_custom_call.1} parent=11 // pred_check
          %p240 = pneg %p182
        $region34: #{tpu_custom_call.1} parent=11 // pred_check_branch
          %242 = sbr.rel (%p240) target = $region36
        $region35: #{tpu_custom_call.1} parent=11 // pred_region
          _
        $region36: #{tpu_custom_call.1} parent=11 // pred_fallthru
          _
      $region12: #{tpu_custom_call.1} parent=5 // pred_fallthru
        _
      %p243 = scmp.lt.s32.totalorder %s16, 8
      // Predicated region
      $region37: #{tpu_custom_call.1} parent=5 // pred_check
        %p244 = pneg %p243
      $region38: #{tpu_custom_call.1} parent=5 // pred_check_branch
        %246 = sbr.rel (%p244) target = $region40
      $region39: #{tpu_custom_call.1} parent=5 // pred_region
        // Predicated region
        $region41: #{tpu_custom_call.1} parent=39 // pred_check
          %p247 = pneg %p50
        $region42: #{tpu_custom_call.1} parent=39 // pred_check_branch
          %249 = sbr.rel (%p247) target = $region44
        $region43: #{tpu_custom_call.1} parent=39 // pred_region
          %s250 = sand.u32 %s40, 1
          %s251 = sand.u32 %s40, 1
          %s252 = smul.addr %s251, 40
          %s253 = scalar_lea.vmem [#allocation2], %s252
          %s254 = smul.u32 2, %s24
          %s255 = smul.addr %s23, 40
          %s256 = sadd.s32 %s254, %s255
          %s257 = smul.addr %s256, 4
          %s258 = scalar_lea.vmem %s0, %s257
          // Predicated region
          $region45: #{tpu_custom_call.1} parent=43 // pred_check
            _
          $region46: #{tpu_custom_call.1} parent=43 // pred_check_branch
            %260 = sbr.rel (0) target = $region48
          $region47: #{tpu_custom_call.1} parent=43 // pred_region
            // Predicated region
            $region49: #{tpu_custom_call.1} parent=47 // pred_check
              _
            $region50: #{tpu_custom_call.1} parent=47 // pred_check_branch
              %262 = sbr.rel (0) target = $region52
            $region51: #{tpu_custom_call.1} parent=47 // pred_region
              // Predicated region
              $region64: #{tpu_custom_call.1} parent=51 // pred_check
                _
              $region65: #{tpu_custom_call.1} parent=51 // pred_check_branch
                %286 = sbr.rel (0) target = $region67
              $region66: #{tpu_custom_call.1} parent=51 // pred_region
                loop: start=0, step=1, limit=1
                $region68: #{tpu_custom_call.1} parent=66 // loop_pre_header
                  _
                $region69: #{tpu_custom_call.1} parent=66 // loop_header
                  %s288 = sphi 0, %s292
                  %p289 = scmp.ge.s32.totalorder %s288, 1
                  %s293 = sphi %s258, %s258
                  %s294 = sphi %s253, %s253
                $region70: #{tpu_custom_call.1} parent=66 // loop_header_branch
                  %291 = sbr.rel (%p289) target = $region74
                $region71: #{tpu_custom_call.1} parent=66 // loop_body
                  %v295 = vld [vmem:[%s293] sm:$0xff]
                  %296 = vst [vmem:[%s294] sm:$0xff] %v295
                  %v297 = vld [vmem:[%s293 + $0x20] sm:$0xff]
                  %298 = vst [vmem:[%s294 + $0x8] sm:$0xff] %v297
                  %v299 = vld [vmem:[%s293 + $0x40] sm:$0xff]
                  %300 = vst [vmem:[%s294 + $0x10] sm:$0xff] %v299
                  %v301 = vld [vmem:[%s293 + $0x60] sm:$0xff]
                  %302 = vst [vmem:[%s294 + $0x18] sm:$0xff] %v301
                  %v303 = vld [vmem:[%s293 + $0x80] sm:$0xff]
                  %304 = vst [vmem:[%s294 + $0x20] sm:$0xff] %v303
                $region72: #{tpu_custom_call.1} parent=66 // loop_footer
                  %s292 = sadd.s32 1, %s288
                $region73: #{tpu_custom_call.1} parent=66 // loop_footer_branch
                  %287 = sbr.rel target = $region69
                $region74: #{tpu_custom_call.1} parent=66 // loop_exit
                  _
              $region67: #{tpu_custom_call.1} parent=51 // pred_fallthru
                _
              // Predicated region
              $region75: #{tpu_custom_call.1} parent=51 // pred_check
                _
              $region76: #{tpu_custom_call.1} parent=51 // pred_check_branch
                %306 = sbr.rel target = $region78
              $region77: #{tpu_custom_call.1} parent=51 // pred_region
                _
              $region78: #{tpu_custom_call.1} parent=51 // pred_fallthru
                _
            $region52: #{tpu_custom_call.1} parent=47 // pred_fallthru
              _
            // Predicated region
            $region53: #{tpu_custom_call.1} parent=47 // pred_check
              _
            $region54: #{tpu_custom_call.1} parent=47 // pred_check_branch
              %264 = sbr.rel target = $region56
            $region55: #{tpu_custom_call.1} parent=47 // pred_region
              %s266 = ssub.s32 256, 1
              loop: start=0, step=1, limit=1
              $region57: #{tpu_custom_call.1} parent=55 // loop_pre_header
                _
              $region58: #{tpu_custom_call.1} parent=55 // loop_header
                %s268 = sphi 0, %s272
                %p269 = scmp.ge.s32.totalorder %s268, 1
                %s273 = sphi %s258, %s258
                %s274 = sphi %s253, %s253
              $region59: #{tpu_custom_call.1} parent=55 // loop_header_branch
                %271 = sbr.rel (%p269) target = $region63
              $region60: #{tpu_custom_call.1} parent=55 // loop_body
                %v275 = vld [vmem:[%s273] sm:%s266]
                %276 = vst [vmem:[%s274] sm:%s266] %v275
                %v277 = vld [vmem:[%s273 + $0x20] sm:%s266]
                %278 = vst [vmem:[%s274 + $0x8] sm:%s266] %v277
                %v279 = vld [vmem:[%s273 + $0x40] sm:%s266]
                %280 = vst [vmem:[%s274 + $0x10] sm:%s266] %v279
                %v281 = vld [vmem:[%s273 + $0x60] sm:%s266]
                %282 = vst [vmem:[%s274 + $0x18] sm:%s266] %v281
                %v283 = vld [vmem:[%s273 + $0x80] sm:%s266]
                %284 = vst [vmem:[%s274 + $0x20] sm:%s266] %v283
              $region61: #{tpu_custom_call.1} parent=55 // loop_footer
                %s272 = sadd.s32 1, %s268
              $region62: #{tpu_custom_call.1} parent=55 // loop_footer_branch
                %267 = sbr.rel target = $region58
              $region63: #{tpu_custom_call.1} parent=55 // loop_exit
                _
            $region56: #{tpu_custom_call.1} parent=47 // pred_fallthru
              _
          $region48: #{tpu_custom_call.1} parent=43 // pred_fallthru
            _
          %307 = vnop
        $region44: #{tpu_custom_call.1} parent=39 // pred_fallthru
          _
      $region40: #{tpu_custom_call.1} parent=5 // pred_fallthru
        _
      %p308 = scmp.le.s32.totalorder 1, %s16
      %p309 = scmp.lt.s32.totalorder %s16, 9
      %p310 = pnand %p308, %p309
      %p311 = pneg %p310
      // Predicated region
      $region79: #{tpu_custom_call.1} parent=5 // pred_check
        _
      $region80: #{tpu_custom_call.1} parent=5 // pred_check_branch
        %313 = sbr.rel (%p310) target = $region82
      $region81: #{tpu_custom_call.1} parent=5 // pred_region
        %s314 = ssub.s32 %s16, 1
        %s315 = sand.u32 %s43, 1
        %s316 = sand.u32 %s43, 1
        %s317 = smul.addr %s316, 40
        %s318 = scalar_lea.vmem [#allocation2], %s317
        // Predicated region
        $region83: #{tpu_custom_call.1} parent=81 // pred_check
          %p319 = pneg %p56
        $region84: #{tpu_custom_call.1} parent=81 // pred_check_branch
          %321 = sbr.rel (%p319) target = $region86
        $region85: #{tpu_custom_call.1} parent=81 // pred_region
          _
        $region86: #{tpu_custom_call.1} parent=81 // pred_fallthru
          _
        %s322 = sand.u32 %s43, 1
        %s323 = sand.u32 %s43, 1
        %s324 = smul.addr %s323, 40
        %s325 = scalar_lea.vmem [#allocation2], %s324
        %p326 = pneg %p56
        %p327 = pneg %p53
        %p328 = pneg %p77
        %p329 = pneg %p74
        %p330 = pneg %p98
        %p331 = pneg %p95
        %p332 = pneg %p119
        %p333 = pneg %p116
        %p334 = pneg %p140
        %p335 = pneg %p137
        %p336 = pneg %p161
        %p337 = pneg %p158
        %p338 = pneg %p182
        %p339 = pneg %p179
        %p340 = pneg %p210
        %p341 = pneg %p207
        %s342 = sand.u32 %s197, 1
        %s343 = scalar_lea.sflag [#allocation4], %s342
        %s344 = sand.u32 %s197, 1
        %s345 = smul.addr %s344, 16
        %s346 = scalar_lea.vmem [#allocation3], %s345
        %s347 = smul.u32 2, %s26
        %s348 = smul.u32 2, %s26
        %v350 = vld [vmem:[%s1] sm:$0xf]
        %v351 = vld [vmem:[%s318] sm:$0xff]
        %v352 = vld [vmem:[%s318 + $0x8] sm:$0xff]
        %v353 = vld [vmem:[%s318 + $0x10] sm:$0xff]
        %v354 = vld [vmem:[%s318 + $0x18] sm:$0xff]
        %v355 = vld [vmem:[%s318 + $0x20] sm:$0x33]
        %v356 = vld [vmem:[%s2] sm:$0xff]
        %358 = vset.pattern.permute.xlu0 0
        %359 = vperm.xlu0 %358, %v356
        %v360 = vpop.permute.xlu0 %359
        %v367 = vunpack.c.l.b16 %v351
        %v368 = vunpack.c.h.b16 %v351
        %v369 = vunpack.c.l.b16 %v352
        %v370 = vunpack.c.h.b16 %v352
        %v371 = vunpack.c.l.b16 %v353
        %v372 = vunpack.c.h.b16 %v353
        %v373 = vunpack.c.l.b16 %v354
        %v374 = vunpack.c.h.b16 %v354
        %v375 = vunpack.c.l.b16 %v355
        %v376 = vunpack.c.h.b16 %v355
        %v377 = vpack.c.b16 %v369, %v367
        %v378 = vpack.c.b16 %v370, %v368
        %v379 = vpack.c.b16 %v373, %v371
        %v380 = vpack.c.b16 %v374, %v372
        %v381 = vpack.c.b16 %v375, %v375
        %v382 = vpack.c.b16 %v376, %v376
        %vm387 = vcmask 293888
        %v389 = vsel %vm387, %v350, 0
        %vm391 = vcmask 1041408
        %v393 = vsel %vm391, %v381, 0
        %v396 = vsel %vm391, %v382, 0
        %398 = vmatprep.subr.bf16.mxu0 0
        %399 = vmatpush1.bf16.msra.mxu0 0
        %400 = vmatprep.subr.bf16.mxu0 0
        %401 = vmatpush1.bf16.msra.mxu0 0
        %402 = vmatprep.subr.bf16.mxu0 0
        %403 = vmatpush1.bf16.msra.mxu0 0
        %404 = vmatprep.subr.bf16.mxu0 0
        %405 = vmatpush1.bf16.msra.mxu0 0
        %406 = vmatprep.subr.bf16.mxu0 0
        %407 = vmatpush1.bf16.msra.mxu0 0
        %408 = vmatprep.subr.bf16.mxu0 %v396
        %409 = vmatpush1.bf16.msra.mxu0 %v393
        %410 = vmatprep.subr.bf16.mxu0 %v380
        %411 = vmatpush1.bf16.msra.mxu0 %v379
        %412 = vmatprep.subr.bf16.mxu0 %v378
        %413 = vmatpush1.bf16.msra.mxu0 %v377
        %414 = vmatprep.subr.bf16.mxu0 0
        %415 = vmatpush2.bf16.msra.mxu0 0
        %416 = vmatprep.subr.bf16.mxu0 0
        %417 = vmatpush2.bf16.msra.mxu0 0
        %418 = vmatprep.subr.bf16.mxu0 0
        %419 = vmatpush2.bf16.msra.mxu0 0
        %420 = vmatprep.subr.bf16.mxu0 0
        %421 = vmatpush2.bf16.msra.mxu0 0
        %422 = vmatprep.subr.bf16.mxu0 0
        %423 = vmatpush2.bf16.msra.mxu0 0
        %424 = vmatprep.subr.bf16.mxu0 0
        %425 = vmatpush2.bf16.msra.mxu0 0
        %426 = vmatprep.subr.bf16.mxu0 0
        %427 = vmatpush2.bf16.msra.mxu0 0
        %428 = vmatprep.subr.bf16.mxu0 0
        %429 = vmatpush2.bf16.msra.mxu0 0
        %430 = vmatprep.mubr.bf16.mxu0 0
        %431 = vmatmul.mubr.bf16.gmra.mxu0 %v389
        %v432 = vpop.f32.mrf.mxu0
        %v433 = vadd.f32 %v360, %v432
        %v434 = vpop.f32.mrf.mxu0
        %v435 = vadd.f32 %v360, %v434
        %v436 = vpop.f32.mrf.mxu0
        %v437 = vpop.f32.mrf.mxu0
        %438 = vdwg.mxu0
        %v439 = vmax.f32 %v433, 0.0
        %v440 = vmax.f32 %v435, 0.0
        %v441 = vld [vmem:[%s3] sm:$0xf]
        %v442 = vpack.c.bf16 %v439, %v439
        %v443 = vpack.c.bf16 %v440, %v440
        %v444 = vld [vmem:[%s4] sm:$0xff]
        %446 = vset.pattern.permute.xlu0 0
        %447 = vperm.xlu0 %446, %v444
        %v448 = vpop.permute.xlu0 %447
        %vm450 = vcmask 64512
        %v452 = vsel %vm450, %v441, 0
        %vm454 = vcmask 1043456
        %v456 = vsel %vm454, %v442, 0
        %v459 = vsel %vm454, %v443, 0
        %461 = vmatprep.subr.bf16.mxu0 0
        %462 = vmatpush1.bf16.msra.mxu0 0
        %463 = vmatprep.subr.bf16.mxu0 0
        %464 = vmatpush1.bf16.msra.mxu0 0
        %465 = vmatprep.subr.bf16.mxu0 0
        %466 = vmatpush1.bf16.msra.mxu0 0
        %467 = vmatprep.subr.bf16.mxu0 0
        %468 = vmatpush1.bf16.msra.mxu0 0
        %469 = vmatprep.subr.bf16.mxu0 0
        %470 = vmatpush1.bf16.msra.mxu0 0
        %471 = vmatprep.subr.bf16.mxu0 0
        %472 = vmatpush1.bf16.msra.mxu0 0
        %473 = vmatprep.subr.bf16.mxu0 0
        %474 = vmatpush1.bf16.msra.mxu0 0
        %475 = vmatprep.subr.bf16.mxu0 %v459
        %476 = vmatpush1.bf16.msra.mxu0 %v456
        %477 = vmatprep.subr.bf16.mxu0 0
        %478 = vmatpush2.bf16.msra.mxu0 0
        %479 = vmatprep.subr.bf16.mxu0 0
        %480 = vmatpush2.bf16.msra.mxu0 0
        %481 = vmatprep.subr.bf16.mxu0 0
        %482 = vmatpush2.bf16.msra.mxu0 0
        %483 = vmatprep.subr.bf16.mxu0 0
        %484 = vmatpush2.bf16.msra.mxu0 0
        %485 = vmatprep.subr.bf16.mxu0 0
        %486 = vmatpush2.bf16.msra.mxu0 0
        %487 = vmatprep.subr.bf16.mxu0 0
        %488 = vmatpush2.bf16.msra.mxu0 0
        %489 = vmatprep.subr.bf16.mxu0 0
        %490 = vmatpush2.bf16.msra.mxu0 0
        %491 = vmatprep.subr.bf16.mxu0 0
        %492 = vmatpush2.bf16.msra.mxu0 0
        %493 = vmatprep.mubr.bf16.mxu0 0
        %494 = vmatmul.mubr.bf16.gmra.mxu0 %v452
        %v495 = vpop.f32.mrf.mxu0
        %v496 = vadd.f32 %v448, %v495
        %v497 = vpop.f32.mrf.mxu0
        %v498 = vadd.f32 %v448, %v497
        %v499 = vpop.f32.mrf.mxu0
        %v500 = vpop.f32.mrf.mxu0
        %501 = vdwg.mxu0
        %v502 = vmax.f32 %v496, 0.0
        %v503 = vmax.f32 %v498, 0.0
        %v504 = vld [vmem:[%s5] sm:$0xf]
        %v505 = vpack.c.bf16 %v502, %v502
        %v506 = vpack.c.bf16 %v503, %v503
        %v507 = vld [vmem:[%s6] sm:$0xff]
        %509 = vset.pattern.permute.xlu0 0
        %510 = vperm.xlu0 %509, %v507
        %v511 = vpop.permute.xlu0 %510
        %v514 = vsel %vm450, %v504, 0
        %v517 = vsel %vm454, %v505, 0
        %v520 = vsel %vm454, %v506, 0
        %522 = vmatprep.subr.bf16.mxu0 0
        %523 = vmatpush1.bf16.msra.mxu0 0
        %524 = vmatprep.subr.bf16.mxu0 0
        %525 = vmatpush1.bf16.msra.mxu0 0
        %526 = vmatprep.subr.bf16.mxu0 0
        %527 = vmatpush1.bf16.msra.mxu0 0
        %528 = vmatprep.subr.bf16.mxu0 0
        %529 = vmatpush1.bf16.msra.mxu0 0
        %530 = vmatprep.subr.bf16.mxu0 0
        %531 = vmatpush1.bf16.msra.mxu0 0
        %532 = vmatprep.subr.bf16.mxu0 0
        %533 = vmatpush1.bf16.msra.mxu0 0
        %534 = vmatprep.subr.bf16.mxu0 0
        %535 = vmatpush1.bf16.msra.mxu0 0
        %536 = vmatprep.subr.bf16.mxu0 %v520
        %537 = vmatpush1.bf16.msra.mxu0 %v517
        %538 = vmatprep.subr.bf16.mxu0 0
        %539 = vmatpush2.bf16.msra.mxu0 0
        %540 = vmatprep.subr.bf16.mxu0 0
        %541 = vmatpush2.bf16.msra.mxu0 0
        %542 = vmatprep.subr.bf16.mxu0 0
        %543 = vmatpush2.bf16.msra.mxu0 0
        %544 = vmatprep.subr.bf16.mxu0 0
        %545 = vmatpush2.bf16.msra.mxu0 0
        %546 = vmatprep.subr.bf16.mxu0 0
        %547 = vmatpush2.bf16.msra.mxu0 0
        %548 = vmatprep.subr.bf16.mxu0 0
        %549 = vmatpush2.bf16.msra.mxu0 0
        %550 = vmatprep.subr.bf16.mxu0 0
        %551 = vmatpush2.bf16.msra.mxu0 0
        %552 = vmatprep.subr.bf16.mxu0 0
        %553 = vmatpush2.bf16.msra.mxu0 0
        %554 = vmatprep.mubr.bf16.mxu0 0
        %555 = vmatmul.mubr.bf16.gmra.mxu0 %v514
        %v556 = vpop.f32.mrf.mxu0
        %v557 = vadd.f32 %v511, %v556
        %v558 = vpop.f32.mrf.mxu0
        %v559 = vadd.f32 %v511, %v558
        %v560 = vpop.f32.mrf.mxu0
        %v561 = vpop.f32.mrf.mxu0
        %562 = vdwg.mxu0
        %v563 = vmax.f32 %v557, 0.0
        %v564 = vmax.f32 %v559, 0.0
        %565 = vst [vmem:[%s346] sm:$0xff] %v563
        %566 = vst [vmem:[%s346 + $0x8] sm:$0xff] %v564
        %s567 = sand.u32 %s197, 1
        %s568 = scalar_lea.sflag [#allocation4], %s567
        %s569 = sand.u32 %s197, 1
        %s570 = smul.addr %s569, 16
        %s571 = scalar_lea.vmem [#allocation3], %s570
        // Predicated region
        $region87: #{tpu_custom_call.1} parent=81 // pred_check
          %p572 = pneg %p207
        $region88: #{tpu_custom_call.1} parent=81 // pred_check_branch
          %574 = sbr.rel (%p572) target = $region90
        $region89: #{tpu_custom_call.1} parent=81 // pred_region
          %s575 = smul.u32 2, %s26
          %s577 = ssub.s32 256, 256
          %578 = vsyncadd %s568, %s577
          %s579 = smul.addr %s25, 8
          %s580 = sadd.s32 %s575, %s579
          %s581 = smul.addr %s580, 128
          %s582 = scalar_lea.hbm %s7, %s581
          %s584 = sshll.u32 %s571, 4
          %s585 = int_to_ptr.vmem [resolvable:$true] %s584
          %587 = dma.vmem_to_hbm [thread:$0]  %s585, 256, %s582, %s568
        $region90: #{tpu_custom_call.1} parent=81 // pred_fallthru
          _
      $region82: #{tpu_custom_call.1} parent=5 // pred_fallthru
        _
      %p588 = scmp.le.s32.totalorder 2, %s16
      // Predicated region
      $region91: #{tpu_custom_call.1} parent=5 // pred_check
        %p589 = pneg %p588
      $region92: #{tpu_custom_call.1} parent=5 // pred_check_branch
        %591 = sbr.rel (%p589) target = $region94
      $region93: #{tpu_custom_call.1} parent=5 // pred_region
        %s592 = ssub.s32 %s16, 2
        // Predicated region
        $region95: #{tpu_custom_call.1} parent=93 // pred_check
          %p593 = pneg %p213
        $region96: #{tpu_custom_call.1} parent=93 // pred_check_branch
          %595 = sbr.rel (%p593) target = $region98
        $region97: #{tpu_custom_call.1} parent=93 // pred_region
          %s596 = sand.u32 %s198, 1
          %s597 = scalar_lea.sflag [#allocation4], %s596
          %s598 = sand.u32 %s198, 1
          %s599 = smul.addr %s598, 16
          %s600 = scalar_lea.vmem [#allocation3], %s599
          %601 = dma.done %s597, 256
        $region98: #{tpu_custom_call.1} parent=93 // pred_fallthru
          _
      $region94: #{tpu_custom_call.1} parent=5 // pred_fallthru
        _
    $region6: #{tpu_custom_call.1} parent=1 // loop_footer
      %s20 = sadd.s32 1, %s16
    $region7: #{tpu_custom_call.1} parent=1 // loop_footer_branch
      %15 = sbr.rel target = $region3
    $region8: #{tpu_custom_call.1} parent=1 // loop_exit
      _
    %602 = vsyncpa [#allocation4], 1
    %s603 = scalar_lea.sflag [#allocation4], 1
    %604 = vsyncpa %s603, 1

</llo_original>
